<compile_context>
chip_gen: v7x
topology: tpu7x:2x2x1
jax: 0.10.0
libtpu: 0.0.40
codegen_flags: <defaults>
</compile_context>

<pallas_src>
import functools

import jax
import jax.numpy as jnp
from jax.experimental import pallas as pl
from jax.experimental.pallas import tpu as pltpu


def _round_up(x, m):
    return ((x + m - 1) // m) * m


def _fcl_kernel(labels_ref, gamma_ref, feat_ref, weights_ref, acc_ref,
                *, num_lane_chunks):
    di = pl.program_id(1)

    # Init the resident per-B-tile accumulator on the first D step.
    @pl.when(di == 0)
    def _():
        acc_ref[...] = jnp.zeros_like(acc_ref)

    feat = feat_ref[...].astype(jnp.float32)        # [TB, TD]
    weights = weights_ref[...].astype(jnp.float32)  # [C, TD]
    gamma_row = gamma_ref[...].astype(jnp.float32)  # [1, C]
    labels = labels_ref[...]                        # [TB, 1] int32

    tb = feat.shape[0]
    c = weights.shape[0]

    # Gamma folded into the one-hot: scaled_onehot[b, c] = gamma[c] if labels[b]==c
    # (padded rows use label == -1 -> all-zero row -> zero contribution).
    class_iota = jax.lax.broadcasted_iota(jnp.int32, (tb, c), 1)
    onehot = class_iota == labels                                  # [TB, C] bool
    scaled_onehot = jnp.where(onehot, gamma_row, jnp.float32(0.0))  # [TB, C]

    centers_batch = jnp.dot(scaled_onehot, weights,
                            precision=jax.lax.Precision.HIGHEST,
                            preferred_element_type=jnp.float32)    # [TB, TD]

    diff = feat - centers_batch
    sq = diff * diff                                               # [TB, TD]

    # Lane-parallel accumulation: fold the TD columns onto 128 lanes with
    # aligned VALU adds only (no XLU cross-lane reduction per step).
    partial = acc_ref[...]                                         # [TB, 128]
    for k in range(num_lane_chunks):
        partial = partial + sq[:, k * 128:(k + 1) * 128]
    acc_ref[...] = partial


def fixed_center_loss(feat, labels, fixed_weights, centers_gamma,
                      loss_weight=0.005, tile_b=None, tile_d=None):
    """feat: [B, D] f32, labels: [B] int, fixed_weights: [C, D] f32,
       centers_gamma: [C, 1] f32  ->  scalar f32 loss."""
    B, D = feat.shape
    C = fixed_weights.shape[0]

    # --- tile selection (generation-aware conservative VMEM budget) ---------
    if tile_b is None:
        tile_b = min(_round_up(B, 8), 128)
    if tile_d is None:
        # Double-buffered feat + weights columns must fit well inside the
        # default scoped VMEM on every generation (v7x physical is only 64 MiB).
        vmem_budget = 24 * 1024 * 1024
        bytes_per_d_col = (tile_b + C) * 4 * 2
        max_td = max(128, (vmem_budget // bytes_per_d_col) // 128 * 128)
        tile_d = int(min(_round_up(D, 128), max_td, 2048))

    B_pad = _round_up(B, tile_b)
    D_pad = _round_up(D, tile_d)

    # --- padding (zeros along D; extra batch rows get label -1 => zero diff) -
    if B_pad != B or D_pad != D:
        feat_p = jnp.zeros((B_pad, D_pad), feat.dtype).at[:B, :D].set(feat)
    else:
        feat_p = feat
    if D_pad != D:
        w_p = jnp.zeros((C, D_pad), fixed_weights.dtype).at[:, :D].set(fixed_weights)
    else:
        w_p = fixed_weights
    labels_p = jnp.full((B_pad, 1), -1, dtype=jnp.int32).at[:B, 0].set(
        labels.astype(jnp.int32))
    gamma_row = centers_gamma.reshape(1, C).astype(jnp.float32)

    num_b = B_pad // tile_b
    num_d = D_pad // tile_d
    num_lane_chunks = tile_d // 128

    kernel = functools.partial(_fcl_kernel, num_lane_chunks=num_lane_chunks)

    cost = pl.CostEstimate(
        flops=2 * B_pad * C * D_pad + 3 * B_pad * D_pad,
        transcendentals=0,
        bytes_accessed=4 * (B_pad * D_pad + num_b * C * D_pad + B_pad * 128),
    )

    partials = pl.pallas_call(
        kernel,
        out_shape=jax.ShapeDtypeStruct((B_pad, 128), jnp.float32),
        grid_spec=pltpu.PrefetchScalarGridSpec(
            num_scalar_prefetch=0,
            grid=(num_b, num_d),
            in_specs=[
                pl.BlockSpec((tile_b, 1), lambda bi, di: (bi, 0)),        # labels
                pl.BlockSpec((1, C), lambda bi, di: (0, 0)),              # gamma row
                pl.BlockSpec((tile_b, tile_d), lambda bi, di: (bi, di)),  # feat
                pl.BlockSpec((C, tile_d), lambda bi, di: (0, di)),        # weights
            ],
            out_specs=pl.BlockSpec((tile_b, 128), lambda bi, di: (bi, 0)),
        ),
        compiler_params=pltpu.CompilerParams(
            dimension_semantics=("parallel", "arbitrary")),
        cost_estimate=cost,
    )(labels_p, gamma_row, feat_p, w_p)

    # Single fused scale: 0.5 * (1 / true B) * loss_weight.
    scale = jnp.float32(0.5 * loss_weight / B)
    return jnp.sum(partials) * scale


if __name__ == "__main__":
    key = jax.random.PRNGKey(0)
    k_feat, k_w, k_lab = jax.random.split(key, 3)

    B, D, C = 8, 32, 10
    loss_weight = 0.005

    feat = jax.random.normal(k_feat, (B, D), dtype=jnp.float32)
    fixed_weights = jax.random.normal(k_w, (C, D), dtype=jnp.float32)
    labels = jax.random.randint(k_lab, (B,), 0, C, dtype=jnp.int32)
    # nn.Parameter(torch.ones(num_class, 1)) -> deterministic ones init
    centers_gamma = jnp.ones((C, 1), dtype=jnp.float32)

    loss = fixed_center_loss(feat, labels, fixed_weights, centers_gamma,
                             loss_weight=loss_weight)
    loss = jax.block_until_ready(loss)

    # Pure-JAX reference sanity check.
    centers = fixed_weights * centers_gamma
    centers_batch = centers[labels]
    ref = 0.5 * jnp.sum((feat - centers_batch) ** 2) / B * loss_weight

    assert jnp.allclose(loss, ref, rtol=1e-5, atol=1e-6), (loss, ref)
    print("KERNEL_OK")
</pallas_src>

<mosaic_0001>
module attributes {stable_mosaic.version = 11 : i64} {
  func.func @_fcl_kernel(%arg0: i32, %arg1: i32, %arg2: memref<8x1xi32, #tpu.memory_space<vmem>>, %arg3: memref<1x10xf32, #tpu.memory_space<vmem>>, %arg4: memref<8x128xf32, #tpu.memory_space<vmem>>, %arg5: memref<10x128xf32, #tpu.memory_space<vmem>>, %arg6: memref<8x128xf32, #tpu.memory_space<vmem>>) attributes {dimension_semantics = [#tpu.dimension_semantics<parallel>, #tpu.dimension_semantics<arbitrary>], iteration_bounds = array<i64: 1, 1>, scalar_prefetch = 0 : i64, scratch_operands = 0 : i64, tpu.core_type = #tpu.core_type<tc>, window_params = [{transform_indices = @transform_0, window_bounds = array<i64: 8, 1>}, {pipeline_mode = #tpu.pipeline_mode<synchronous>, transform_indices = @transform_1, window_bounds = array<i64: 1, 10>}, {transform_indices = @transform_2, window_bounds = array<i64: 8, 128>}, {transform_indices = @transform_3, window_bounds = array<i64: 10, 128>}, {transform_indices = @transform_4, window_bounds = array<i64: 8, 128>}]} {
    %c0_i32 = arith.constant 0 : i32
    %0 = arith.cmpi eq, %arg1, %c0_i32 : i32
    %1 = arith.extui %0 : i1 to i32
    %c0_i32_0 = arith.constant 0 : i32
    %2 = arith.cmpi ne, %1, %c0_i32_0 : i32
    scf.if %2 {
      %cst_13 = arith.constant 0.000000e+00 : f32
      %20 = vector.broadcast %cst_13 : f32 to vector<8x128xf32>
      %c0_14 = arith.constant 0 : index
      %c0_15 = arith.constant 0 : index
      %21 = vector.load %arg6[%c0_14, %c0_15] : memref<8x128xf32, #tpu.memory_space<vmem>>, vector<8x128xf32>
      tpu.vector_store %arg6[%c0_14, %c0_15], %20 {strides = array<i32>} : memref<8x128xf32, #tpu.memory_space<vmem>>, vector<8x128xf32>,
    } else {
    }
    %c0 = arith.constant 0 : index
    %c0_1 = arith.constant 0 : index
    %3 = vector.load %arg4[%c0, %c0_1] : memref<8x128xf32, #tpu.memory_space<vmem>>, vector<8x128xf32>
    %c0_2 = arith.constant 0 : index
    %c0_3 = arith.constant 0 : index
    %4 = vector.load %arg5[%c0_2, %c0_3] : memref<10x128xf32, #tpu.memory_space<vmem>>, vector<10x128xf32>
    %c0_4 = arith.constant 0 : index
    %c0_5 = arith.constant 0 : index
    %5 = vector.load %arg3[%c0_4, %c0_5] : memref<1x10xf32, #tpu.memory_space<vmem>>, vector<1x10xf32>
    %c0_6 = arith.constant 0 : index
    %c0_7 = arith.constant 0 : index
    %6 = vector.load %arg2[%c0_6, %c0_7] : memref<8x1xi32, #tpu.memory_space<vmem>>, vector<8x1xi32>
    %7 = tpu.iota {dimensions = array<i32: 1>} : vector<8x10xi32>
    %8 = vector.broadcast %6 : vector<8x1xi32> to vector<8x10xi32>
    %9 = arith.cmpi eq, %7, %8 : vector<8x10xi32>
    %cst = arith.constant 0.000000e+00 : f32
    %10 = vector.shape_cast %5 : vector<1x10xf32> to vector<1x10xf32>
    %11 = vector.broadcast %10 : vector<1x10xf32> to vector<8x10xf32>
    %12 = vector.broadcast %cst : f32 to vector<8x10xf32>
    %13 = arith.select %9, %11, %12 : vector<8x10xi1>, vector<8x10xf32>
    %cst_8 = arith.constant dense<0.000000e+00> : vector<8x128xf32>
    %14 = tpu.matmul %13, %4, %cst_8 {dimension_numbers = #tpu.dot_dimension_numbers<[1], [0], [0], [1], [0, 0, 1, 1], [], []>, precision = #tpu.contract_precision<fp32>} : vector<8x10xf32>, vector<10x128xf32>, vector<8x128xf32> -> vector<8x128xf32>
    %15 = arith.subf %3, %14 : vector<8x128xf32>
    %16 = arith.mulf %15, %15 : vector<8x128xf32>
    %c0_9 = arith.constant 0 : index
    %c0_10 = arith.constant 0 : index
    %17 = vector.load %arg6[%c0_9, %c0_10] : memref<8x128xf32, #tpu.memory_space<vmem>>, vector<8x128xf32>
    %18 = arith.addf %17, %16 : vector<8x128xf32>
    %c0_11 = arith.constant 0 : index
    %c0_12 = arith.constant 0 : index
    %19 = vector.load %arg6[%c0_11, %c0_12] : memref<8x128xf32, #tpu.memory_space<vmem>>, vector<8x128xf32>
    tpu.vector_store %arg6[%c0_11, %c0_12], %18 {strides = array<i32>} : memref<8x128xf32, #tpu.memory_space<vmem>>, vector<8x128xf32>,
    return
  }
  func.func @transform_0(%arg0: i32, %arg1: i32) -> (i32, i32) {
    %c0_i32 = arith.constant 0 : i32
    %c0_i32_0 = arith.constant 0 : i32
    return %arg0, %c0_i32 : i32, i32
  }
  func.func @transform_1(%arg0: i32, %arg1: i32) -> (i32, i32) {
    %c0_i32 = arith.constant 0 : i32
    %c0_i32_0 = arith.constant 0 : i32
    %c0_i32_1 = arith.constant 0 : i32
    return %c0_i32, %c0_i32_0 : i32, i32
  }
  func.func @transform_2(%arg0: i32, %arg1: i32) -> (i32, i32) {
    %c0_i32 = arith.constant 0 : i32
    return %arg0, %arg1 : i32, i32
  }
  func.func @transform_3(%arg0: i32, %arg1: i32) -> (i32, i32) {
    %c0_i32 = arith.constant 0 : i32
    %c0_i32_0 = arith.constant 0 : i32
    return %c0_i32, %arg1 : i32, i32
  }
  func.func @transform_4(%arg0: i32, %arg1: i32) -> (i32, i32) {
    %c0_i32 = arith.constant 0 : i32
    %c0_i32_0 = arith.constant 0 : i32
    return %arg0, %c0_i32 : i32, i32
  }
}

</mosaic_0001>

<llo_original>
// kernel: tpu_custom_call.1
$region0: #{tpu_custom_call.1}
  #allocation0 [shape = 'u32[]', space=smem, size = 0x4, offset = 0x4, fixed_abs, tag = 'smem constant byte address 0x4 - core index']
  #allocation1 [shape = 'u32[144,128]{1,0:T(1,128)}', space=vmem, size = 0x12000, scoped, tag = 'internal scratch']
  %s0 = inlined_call_operand.vmem [shape: s32[8,1], index: 0, kind: input, shape index: {}]
  %s1 = inlined_call_operand.vmem [shape: f32[1,10], index: 1, kind: input, shape index: {}]
  %s2 = inlined_call_operand.hbm [shape: f32[8,128], index: 2, kind: input, shape index: {}]
  %s3 = inlined_call_operand.vmem [shape: f32[10,128], index: 3, kind: input, shape index: {}]
  %s4 = inlined_call_operand.hbm [shape: f32[8,128], index: 4, kind: output, shape index: {}]
  %s5 = sld [smem:[#allocation0]]
  $region34: #{tpu_custom_call.1} parent=0
    _
  %s7 = ssub.s32 1, %s5
  %s8 = scalar_select 0, %s7, %s5
  $region1: #{tpu_custom_call.1} parent=0
    #allocation2 [shape = 'u8[4096]{0}', space=vmem, size = 0x1000, scoped, tag = 'input window, operand 2, single buffered']
    #allocation3 [shape = 's32[1]{0}', space=sflag, size = 0x4, scoped, tag = 'scoped memory for tpu_custom_call.1']
    #allocation4 [shape = 's32[1]{0}', space=sflag, size = 0x4, scoped, tag = 'scoped memory for tpu_custom_call.1']
    #allocation5 [shape = 'u8[4096]{0}', space=vmem, size = 0x1000, scoped, tag = 'output window, operand 0, single buffered']
    %9 = vsyncpa [#allocation3], 0
    %10 = vsyncpa [#allocation4], 0
    // Predicated region
    $region2: #{tpu_custom_call.1} parent=1 // pred_check
      _
    $region3: #{tpu_custom_call.1} parent=1 // pred_check_branch
      %12 = sbr.rel (0) target = $region5
    $region4: #{tpu_custom_call.1} parent=1 // pred_region
      _
    $region5: #{tpu_custom_call.1} parent=1 // pred_fallthru
      _
    // Predicated region
    $region6: #{tpu_custom_call.1} parent=1 // pred_check
      _
    $region7: #{tpu_custom_call.1} parent=1 // pred_check_branch
      %14 = sbr.rel (0) target = $region9
    $region8: #{tpu_custom_call.1} parent=1 // pred_region
      _
    $region9: #{tpu_custom_call.1} parent=1 // pred_fallthru
      _
    // Predicated region
    $region10: #{tpu_custom_call.1} parent=1 // pred_check
      _
    $region11: #{tpu_custom_call.1} parent=1 // pred_check_branch
      %16 = sbr.rel (0) target = $region13
    $region12: #{tpu_custom_call.1} parent=1 // pred_region
      %s18 = ssub.s32 128, 128
      %19 = vsyncadd [#allocation3], %s18
      %s21 = sshll.u32 [#allocation2], 4
      %s22 = int_to_ptr.vmem [resolvable:$true] %s21
      %24 = dma.hbm_to_vmem [thread:$0]  %s2, 128, %s22, [#allocation3]
    $region13: #{tpu_custom_call.1} parent=1 // pred_fallthru
      _
    // Predicated region
    $region14: #{tpu_custom_call.1} parent=1 // pred_check
      _
    $region15: #{tpu_custom_call.1} parent=1 // pred_check_branch
      %26 = sbr.rel (0) target = $region17
    $region16: #{tpu_custom_call.1} parent=1 // pred_region
      _
    $region17: #{tpu_custom_call.1} parent=1 // pred_fallthru
      _
    // Predicated region
    $region18: #{tpu_custom_call.1} parent=1 // pred_check
      _
    $region19: #{tpu_custom_call.1} parent=1 // pred_check_branch
      %28 = sbr.rel (0) target = $region21
    $region20: #{tpu_custom_call.1} parent=1 // pred_region
      %29 = dma.done [#allocation3], 128
    $region21: #{tpu_custom_call.1} parent=1 // pred_fallthru
      _
    %p30 = scmp.eq.s32.totalorder 0, 0
    // Predicated region
    $region22: #{tpu_custom_call.1} parent=1 // pred_check
      %p31 = pneg %p30
    $region23: #{tpu_custom_call.1} parent=1 // pred_check_branch
      %33 = sbr.rel (%p31) target = $region25
    $region24: #{tpu_custom_call.1} parent=1 // pred_region
      %34 = vst [vmem:[#allocation5] sm:$0xff] 0.0
    $region25: #{tpu_custom_call.1} parent=1 // pred_fallthru
      _
    %v35 = vld [vmem:[#allocation2] sm:$0xff]
    %v36 = vld [vmem:[%s3] sm:$0xff]
    %v37 = vld [vmem:[%s3 + $0x8] sm:$0x3]
    %v38 = vld [vmem:[%s1] sm:$0x1]
    %v39 = vld [vmem:[%s0] sm:$0xff]
    %v40 = vlaneseq
    %v41 = vand.u32 %v40, 127
    %42 = vset.pattern.permute.xlu0 0
    %43 = vperm.xlu0 %42, %v39
    %v44 = vpop.permute.xlu0 %43
    %vm45 = vcmp.eq.s32.totalorder %v41, %v44
    %v47 = vlaneseq
    %v48 = vshrl.u32 %v47, 7
    %v49 = vsub.s32 0, %v48
    %v50 = vrot.slane %v38, %v49
    %v52 = vsel %vm45, %v50, 0.0
    %vm53 = vcmask 80896
    %v55 = vsel %vm53, %v52, 0
    %vm57 = vcmask 1041408
    %v59 = vsel %vm57, %v37, 0
    %61 = vmatprep.subr.mxu0 0.0
    %v62 = vand.u32 %v36, 4294901760
    %63 = vmatpush1.msra.mxu0 %v62
    %64 = vmatprep.subr.mxu0 0.0
    %v65 = vand.u32 %v59, 4294901760
    %66 = vmatpush1.msra.mxu0 %v65
    %67 = vmatprep.subr.mxu0 0.0
    %68 = vmatpush1.msra.mxu0 0.0
    %69 = vmatprep.subr.mxu0 0.0
    %70 = vmatpush1.msra.mxu0 0.0
    %71 = vmatprep.subr.mxu0 0.0
    %72 = vmatpush1.msra.mxu0 0.0
    %73 = vmatprep.subr.mxu0 0.0
    %74 = vmatpush1.msra.mxu0 0.0
    %75 = vmatprep.subr.mxu0 0.0
    %76 = vmatpush1.msra.mxu0 0.0
    %77 = vmatprep.subr.mxu0 0.0
    %78 = vmatpush1.msra.mxu0 0.0
    %79 = vmatprep.subr.mxu0 0.0
    %80 = vmatpush1.msra.mxu0 0.0
    %81 = vmatprep.subr.mxu0 0.0
    %82 = vmatpush1.msra.mxu0 0.0
    %83 = vmatprep.subr.mxu0 0.0
    %84 = vmatpush1.msra.mxu0 0.0
    %85 = vmatprep.subr.mxu0 0.0
    %86 = vmatpush1.msra.mxu0 0.0
    %87 = vmatprep.subr.mxu0 0.0
    %88 = vmatpush1.msra.mxu0 0.0
    %89 = vmatprep.subr.mxu0 0.0
    %90 = vmatpush1.msra.mxu0 0.0
    %91 = vmatprep.subr.mxu0 0.0
    %92 = vmatpush1.msra.mxu0 0.0
    %93 = vmatprep.subr.mxu0 0.0
    %94 = vmatpush1.msra.mxu0 0.0
    %95 = vmatprep.subr.mxu0 0.0
    %96 = vmatpush1.msra.mxu0 0.0
    %97 = vmatprep.subr.mxu0 0.0
    %98 = vmatpush1.msra.mxu0 0.0
    %99 = vmatprep.subr.mxu0 0.0
    %100 = vmatpush1.msra.mxu0 0.0
    %101 = vmatprep.subr.mxu0 0.0
    %102 = vmatpush1.msra.mxu0 0.0
    %103 = vmatprep.subr.mxu0 0.0
    %104 = vmatpush1.msra.mxu0 0.0
    %105 = vmatprep.subr.mxu0 0.0
    %106 = vmatpush1.msra.mxu0 0.0
    %107 = vmatprep.subr.mxu0 0.0
    %108 = vmatpush1.msra.mxu0 0.0
    %109 = vmatprep.subr.mxu0 0.0
    %110 = vmatpush1.msra.mxu0 0.0
    %111 = vmatprep.subr.mxu0 0.0
    %112 = vmatpush1.msra.mxu0 0.0
    %113 = vmatprep.subr.mxu0 0.0
    %114 = vmatpush1.msra.mxu0 0.0
    %115 = vmatprep.subr.mxu0 0.0
    %116 = vmatpush1.msra.mxu0 0.0
    %117 = vmatprep.subr.mxu0 0.0
    %118 = vmatpush1.msra.mxu0 0.0
    %119 = vmatprep.subr.mxu0 0.0
    %120 = vmatpush1.msra.mxu0 0.0
    %121 = vmatprep.subr.mxu0 0.0
    %122 = vmatpush1.msra.mxu0 0.0
    %123 = vmatprep.subr.mxu0 0.0
    %124 = vmatpush1.msra.mxu0 0.0
    %125 = vmatprep.subr.mxu0 0.0
    %126 = vmatpush1.msra.mxu0 0.0
    %127 = vmatprep.mubr.f32.mxu0 0.0
    %v128 = vand.u32 %v55, 4294901760
    %v129 = vsub.f32 %v55, %v128
    %v130 = vand.u32 %v129, 4294901760
    %v131 = vsub.f32 %v129, %v130
    %v132 = vand.u32 %v131, 4294901760
    %133 = vmatmul.mubr.f32.gmra.mrb[0].mxu0 %v132
    %v134 = vpop.f32.mrb[0].mxu0
    %v135 = vadd.f32 0.0, %v134
    %v136 = vpop.f32.mrb[0].mxu0
    %137 = vdwg.mxu0
    %138 = vmatprep.subr.mxu0 0.0
    %v139 = vand.u32 %v36, 4294901760
    %v140 = vsub.f32 %v36, %v139
    %v141 = vand.u32 %v140, 4294901760
    %v142 = vsub.f32 %v140, %v141
    %v143 = vand.u32 %v142, 4294901760
    %144 = vmatpush1.msra.mxu0 %v143
    %145 = vmatprep.subr.mxu0 0.0
    %v146 = vand.u32 %v59, 4294901760
    %v147 = vsub.f32 %v59, %v146
    %v148 = vand.u32 %v147, 4294901760
    %v149 = vsub.f32 %v147, %v148
    %v150 = vand.u32 %v149, 4294901760
    %151 = vmatpush1.msra.mxu0 %v150
    %152 = vmatprep.subr.mxu0 0.0
    %153 = vmatpush1.msra.mxu0 0.0
    %154 = vmatprep.subr.mxu0 0.0
    %155 = vmatpush1.msra.mxu0 0.0
    %156 = vmatprep.subr.mxu0 0.0
    %157 = vmatpush1.msra.mxu0 0.0
    %158 = vmatprep.subr.mxu0 0.0
    %159 = vmatpush1.msra.mxu0 0.0
    %160 = vmatprep.subr.mxu0 0.0
    %161 = vmatpush1.msra.mxu0 0.0
    %162 = vmatprep.subr.mxu0 0.0
    %163 = vmatpush1.msra.mxu0 0.0
    %164 = vmatprep.subr.mxu0 0.0
    %165 = vmatpush1.msra.mxu0 0.0
    %166 = vmatprep.subr.mxu0 0.0
    %167 = vmatpush1.msra.mxu0 0.0
    %168 = vmatprep.subr.mxu0 0.0
    %169 = vmatpush1.msra.mxu0 0.0
    %170 = vmatprep.subr.mxu0 0.0
    %171 = vmatpush1.msra.mxu0 0.0
    %172 = vmatprep.subr.mxu0 0.0
    %173 = vmatpush1.msra.mxu0 0.0
    %174 = vmatprep.subr.mxu0 0.0
    %175 = vmatpush1.msra.mxu0 0.0
    %176 = vmatprep.subr.mxu0 0.0
    %177 = vmatpush1.msra.mxu0 0.0
    %178 = vmatprep.subr.mxu0 0.0
    %179 = vmatpush1.msra.mxu0 0.0
    %180 = vmatprep.subr.mxu0 0.0
    %181 = vmatpush1.msra.mxu0 0.0
    %182 = vmatprep.subr.mxu0 0.0
    %183 = vmatpush1.msra.mxu0 0.0
    %184 = vmatprep.subr.mxu0 0.0
    %185 = vmatpush1.msra.mxu0 0.0
    %186 = vmatprep.subr.mxu0 0.0
    %187 = vmatpush1.msra.mxu0 0.0
    %188 = vmatprep.subr.mxu0 0.0
    %189 = vmatpush1.msra.mxu0 0.0
    %190 = vmatprep.subr.mxu0 0.0
    %191 = vmatpush1.msra.mxu0 0.0
    %192 = vmatprep.subr.mxu0 0.0
    %193 = vmatpush1.msra.mxu0 0.0
    %194 = vmatprep.subr.mxu0 0.0
    %195 = vmatpush1.msra.mxu0 0.0
    %196 = vmatprep.subr.mxu0 0.0
    %197 = vmatpush1.msra.mxu0 0.0
    %198 = vmatprep.subr.mxu0 0.0
    %199 = vmatpush1.msra.mxu0 0.0
    %200 = vmatprep.subr.mxu0 0.0
    %201 = vmatpush1.msra.mxu0 0.0
    %202 = vmatprep.subr.mxu0 0.0
    %203 = vmatpush1.msra.mxu0 0.0
    %204 = vmatprep.subr.mxu0 0.0
    %205 = vmatpush1.msra.mxu0 0.0
    %206 = vmatprep.subr.mxu0 0.0
    %207 = vmatpush1.msra.mxu0 0.0
    %208 = vmatprep.subr.mxu0 0.0
    %209 = vmatpush1.msra.mxu0 0.0
    %210 = vmatprep.subr.mxu0 0.0
    %211 = vmatpush1.msra.mxu0 0.0
    %212 = vmatprep.mubr.f32.mxu0 0.0
    %v213 = vand.u32 %v55, 4294901760
    %214 = vmatmul.mubr.f32.gmra.mrb[0].mxu0 %v213
    %v215 = vpop.f32.mrb[0].mxu0
    %v216 = vadd.f32 %v135, %v215
    %v217 = vpop.f32.mrb[0].mxu0
    %218 = vdwg.mxu0
    %219 = vmatprep.subr.mxu0 0.0
    %v220 = vand.u32 %v36, 4294901760
    %v221 = vsub.f32 %v36, %v220
    %222 = vmatpush1.msra.mxu0 %v221
    %223 = vmatprep.subr.mxu0 0.0
    %v224 = vand.u32 %v59, 4294901760
    %v225 = vsub.f32 %v59, %v224
    %226 = vmatpush1.msra.mxu0 %v225
    %227 = vmatprep.subr.mxu0 0.0
    %228 = vmatpush1.msra.mxu0 0.0
    %229 = vmatprep.subr.mxu0 0.0
    %230 = vmatpush1.msra.mxu0 0.0
    %231 = vmatprep.subr.mxu0 0.0
    %232 = vmatpush1.msra.mxu0 0.0
    %233 = vmatprep.subr.mxu0 0.0
    %234 = vmatpush1.msra.mxu0 0.0
    %235 = vmatprep.subr.mxu0 0.0
    %236 = vmatpush1.msra.mxu0 0.0
    %237 = vmatprep.subr.mxu0 0.0
    %238 = vmatpush1.msra.mxu0 0.0
    %239 = vmatprep.subr.mxu0 0.0
    %240 = vmatpush1.msra.mxu0 0.0
    %241 = vmatprep.subr.mxu0 0.0
    %242 = vmatpush1.msra.mxu0 0.0
    %243 = vmatprep.subr.mxu0 0.0
    %244 = vmatpush1.msra.mxu0 0.0
    %245 = vmatprep.subr.mxu0 0.0
    %246 = vmatpush1.msra.mxu0 0.0
    %247 = vmatprep.subr.mxu0 0.0
    %248 = vmatpush1.msra.mxu0 0.0
    %249 = vmatprep.subr.mxu0 0.0
    %250 = vmatpush1.msra.mxu0 0.0
    %251 = vmatprep.subr.mxu0 0.0
    %252 = vmatpush1.msra.mxu0 0.0
    %253 = vmatprep.subr.mxu0 0.0
    %254 = vmatpush1.msra.mxu0 0.0
    %255 = vmatprep.subr.mxu0 0.0
    %256 = vmatpush1.msra.mxu0 0.0
    %257 = vmatprep.subr.mxu0 0.0
    %258 = vmatpush1.msra.mxu0 0.0
    %259 = vmatprep.subr.mxu0 0.0
    %260 = vmatpush1.msra.mxu0 0.0
    %261 = vmatprep.subr.mxu0 0.0
    %262 = vmatpush1.msra.mxu0 0.0
    %263 = vmatprep.subr.mxu0 0.0
    %264 = vmatpush1.msra.mxu0 0.0
    %265 = vmatprep.subr.mxu0 0.0
    %266 = vmatpush1.msra.mxu0 0.0
    %267 = vmatprep.subr.mxu0 0.0
    %268 = vmatpush1.msra.mxu0 0.0
    %269 = vmatprep.subr.mxu0 0.0
    %270 = vmatpush1.msra.mxu0 0.0
    %271 = vmatprep.subr.mxu0 0.0
    %272 = vmatpush1.msra.mxu0 0.0
    %273 = vmatprep.subr.mxu0 0.0
    %274 = vmatpush1.msra.mxu0 0.0
    %275 = vmatprep.subr.mxu0 0.0
    %276 = vmatpush1.msra.mxu0 0.0
    %277 = vmatprep.subr.mxu0 0.0
    %278 = vmatpush1.msra.mxu0 0.0
    %279 = vmatprep.subr.mxu0 0.0
    %280 = vmatpush1.msra.mxu0 0.0
    %281 = vmatprep.subr.mxu0 0.0
    %282 = vmatpush1.msra.mxu0 0.0
    %283 = vmatprep.subr.mxu0 0.0
    %284 = vmatpush1.msra.mxu0 0.0
    %285 = vmatprep.subr.mxu0 0.0
    %286 = vmatpush1.msra.mxu0 0.0
    %287 = vmatprep.mubr.f32.mxu0 0.0
    %v288 = vand.u32 %v55, 4294901760
    %v289 = vsub.f32 %v55, %v288
    %290 = vmatmul.mubr.f32.gmra.mrb[0].mxu0 %v289
    %v291 = vpop.f32.mrb[0].mxu0
    %v292 = vadd.f32 %v216, %v291
    %v293 = vpop.f32.mrb[0].mxu0
    %294 = vdwg.mxu0
    %295 = vmatprep.subr.mxu0 0.0
    %v296 = vand.u32 %v36, 4294901760
    %297 = vmatpush1.msra.mxu0 %v296
    %298 = vmatprep.subr.mxu0 0.0
    %v299 = vand.u32 %v59, 4294901760
    %300 = vmatpush1.msra.mxu0 %v299
    %301 = vmatprep.subr.mxu0 0.0
    %302 = vmatpush1.msra.mxu0 0.0
    %303 = vmatprep.subr.mxu0 0.0
    %304 = vmatpush1.msra.mxu0 0.0
    %305 = vmatprep.subr.mxu0 0.0
    %306 = vmatpush1.msra.mxu0 0.0
    %307 = vmatprep.subr.mxu0 0.0
    %308 = vmatpush1.msra.mxu0 0.0
    %309 = vmatprep.subr.mxu0 0.0
    %310 = vmatpush1.msra.mxu0 0.0
    %311 = vmatprep.subr.mxu0 0.0
    %312 = vmatpush1.msra.mxu0 0.0
    %313 = vmatprep.subr.mxu0 0.0
    %314 = vmatpush1.msra.mxu0 0.0
    %315 = vmatprep.subr.mxu0 0.0
    %316 = vmatpush1.msra.mxu0 0.0
    %317 = vmatprep.subr.mxu0 0.0
    %318 = vmatpush1.msra.mxu0 0.0
    %319 = vmatprep.subr.mxu0 0.0
    %320 = vmatpush1.msra.mxu0 0.0
    %321 = vmatprep.subr.mxu0 0.0
    %322 = vmatpush1.msra.mxu0 0.0
    %323 = vmatprep.subr.mxu0 0.0
    %324 = vmatpush1.msra.mxu0 0.0
    %325 = vmatprep.subr.mxu0 0.0
    %326 = vmatpush1.msra.mxu0 0.0
    %327 = vmatprep.subr.mxu0 0.0
    %328 = vmatpush1.msra.mxu0 0.0
    %329 = vmatprep.subr.mxu0 0.0
    %330 = vmatpush1.msra.mxu0 0.0
    %331 = vmatprep.subr.mxu0 0.0
    %332 = vmatpush1.msra.mxu0 0.0
    %333 = vmatprep.subr.mxu0 0.0
    %334 = vmatpush1.msra.mxu0 0.0
    %335 = vmatprep.subr.mxu0 0.0
    %336 = vmatpush1.msra.mxu0 0.0
    %337 = vmatprep.subr.mxu0 0.0
    %338 = vmatpush1.msra.mxu0 0.0
    %339 = vmatprep.subr.mxu0 0.0
    %340 = vmatpush1.msra.mxu0 0.0
    %341 = vmatprep.subr.mxu0 0.0
    %342 = vmatpush1.msra.mxu0 0.0
    %343 = vmatprep.subr.mxu0 0.0
    %344 = vmatpush1.msra.mxu0 0.0
    %345 = vmatprep.subr.mxu0 0.0
    %346 = vmatpush1.msra.mxu0 0.0
    %347 = vmatprep.subr.mxu0 0.0
    %348 = vmatpush1.msra.mxu0 0.0
    %349 = vmatprep.subr.mxu0 0.0
    %350 = vmatpush1.msra.mxu0 0.0
    %351 = vmatprep.subr.mxu0 0.0
    %352 = vmatpush1.msra.mxu0 0.0
    %353 = vmatprep.subr.mxu0 0.0
    %354 = vmatpush1.msra.mxu0 0.0
    %355 = vmatprep.subr.mxu0 0.0
    %356 = vmatpush1.msra.mxu0 0.0
    %357 = vmatprep.subr.mxu0 0.0
    %358 = vmatpush1.msra.mxu0 0.0
    %359 = vmatprep.subr.mxu0 0.0
    %360 = vmatpush1.msra.mxu0 0.0
    %361 = vmatprep.mubr.f32.mxu0 0.0
    %v362 = vand.u32 %v55, 4294901760
    %v363 = vsub.f32 %v55, %v362
    %v364 = vand.u32 %v363, 4294901760
    %365 = vmatmul.mubr.f32.gmra.mrb[0].mxu0 %v364
    %v366 = vpop.f32.mrb[0].mxu0
    %v367 = vadd.f32 %v292, %v366
    %v368 = vpop.f32.mrb[0].mxu0
    %369 = vdwg.mxu0
    %370 = vmatprep.subr.mxu0 0.0
    %v371 = vand.u32 %v36, 4294901760
    %v372 = vsub.f32 %v36, %v371
    %v373 = vand.u32 %v372, 4294901760
    %374 = vmatpush1.msra.mxu0 %v373
    %375 = vmatprep.subr.mxu0 0.0
    %v376 = vand.u32 %v59, 4294901760
    %v377 = vsub.f32 %v59, %v376
    %v378 = vand.u32 %v377, 4294901760
    %379 = vmatpush1.msra.mxu0 %v378
    %380 = vmatprep.subr.mxu0 0.0
    %381 = vmatpush1.msra.mxu0 0.0
    %382 = vmatprep.subr.mxu0 0.0
    %383 = vmatpush1.msra.mxu0 0.0
    %384 = vmatprep.subr.mxu0 0.0
    %385 = vmatpush1.msra.mxu0 0.0
    %386 = vmatprep.subr.mxu0 0.0
    %387 = vmatpush1.msra.mxu0 0.0
    %388 = vmatprep.subr.mxu0 0.0
    %389 = vmatpush1.msra.mxu0 0.0
    %390 = vmatprep.subr.mxu0 0.0
    %391 = vmatpush1.msra.mxu0 0.0
    %392 = vmatprep.subr.mxu0 0.0
    %393 = vmatpush1.msra.mxu0 0.0
    %394 = vmatprep.subr.mxu0 0.0
    %395 = vmatpush1.msra.mxu0 0.0
    %396 = vmatprep.subr.mxu0 0.0
    %397 = vmatpush1.msra.mxu0 0.0
    %398 = vmatprep.subr.mxu0 0.0
    %399 = vmatpush1.msra.mxu0 0.0
    %400 = vmatprep.subr.mxu0 0.0
    %401 = vmatpush1.msra.mxu0 0.0
    %402 = vmatprep.subr.mxu0 0.0
    %403 = vmatpush1.msra.mxu0 0.0
    %404 = vmatprep.subr.mxu0 0.0
    %405 = vmatpush1.msra.mxu0 0.0
    %406 = vmatprep.subr.mxu0 0.0
    %407 = vmatpush1.msra.mxu0 0.0
    %408 = vmatprep.subr.mxu0 0.0
    %409 = vmatpush1.msra.mxu0 0.0
    %410 = vmatprep.subr.mxu0 0.0
    %411 = vmatpush1.msra.mxu0 0.0
    %412 = vmatprep.subr.mxu0 0.0
    %413 = vmatpush1.msra.mxu0 0.0
    %414 = vmatprep.subr.mxu0 0.0
    %415 = vmatpush1.msra.mxu0 0.0
    %416 = vmatprep.subr.mxu0 0.0
    %417 = vmatpush1.msra.mxu0 0.0
    %418 = vmatprep.subr.mxu0 0.0
    %419 = vmatpush1.msra.mxu0 0.0
    %420 = vmatprep.subr.mxu0 0.0
    %421 = vmatpush1.msra.mxu0 0.0
    %422 = vmatprep.subr.mxu0 0.0
    %423 = vmatpush1.msra.mxu0 0.0
    %424 = vmatprep.subr.mxu0 0.0
    %425 = vmatpush1.msra.mxu0 0.0
    %426 = vmatprep.subr.mxu0 0.0
    %427 = vmatpush1.msra.mxu0 0.0
    %428 = vmatprep.subr.mxu0 0.0
    %429 = vmatpush1.msra.mxu0 0.0
    %430 = vmatprep.subr.mxu0 0.0
    %431 = vmatpush1.msra.mxu0 0.0
    %432 = vmatprep.subr.mxu0 0.0
    %433 = vmatpush1.msra.mxu0 0.0
    %434 = vmatprep.subr.mxu0 0.0
    %435 = vmatpush1.msra.mxu0 0.0
    %436 = vmatprep.subr.mxu0 0.0
    %437 = vmatpush1.msra.mxu0 0.0
    %438 = vmatprep.subr.mxu0 0.0
    %439 = vmatpush1.msra.mxu0 0.0
    %440 = vmatprep.mubr.f32.mxu0 0.0
    %v441 = vand.u32 %v55, 4294901760
    %442 = vmatmul.mubr.f32.gmra.mrb[0].mxu0 %v441
    %v443 = vpop.f32.mrb[0].mxu0
    %v444 = vadd.f32 %v367, %v443
    %v445 = vpop.f32.mrb[0].mxu0
    %446 = vdwg.mxu0
    %447 = vmatprep.subr.mxu0 0.0
    %v448 = vand.u32 %v36, 4294901760
    %449 = vmatpush1.msra.mxu0 %v448
    %450 = vmatprep.subr.mxu0 0.0
    %v451 = vand.u32 %v59, 4294901760
    %452 = vmatpush1.msra.mxu0 %v451
    %453 = vmatprep.subr.mxu0 0.0
    %454 = vmatpush1.msra.mxu0 0.0
    %455 = vmatprep.subr.mxu0 0.0
    %456 = vmatpush1.msra.mxu0 0.0
    %457 = vmatprep.subr.mxu0 0.0
    %458 = vmatpush1.msra.mxu0 0.0
    %459 = vmatprep.subr.mxu0 0.0
    %460 = vmatpush1.msra.mxu0 0.0
    %461 = vmatprep.subr.mxu0 0.0
    %462 = vmatpush1.msra.mxu0 0.0
    %463 = vmatprep.subr.mxu0 0.0
    %464 = vmatpush1.msra.mxu0 0.0
    %465 = vmatprep.subr.mxu0 0.0
    %466 = vmatpush1.msra.mxu0 0.0
    %467 = vmatprep.subr.mxu0 0.0
    %468 = vmatpush1.msra.mxu0 0.0
    %469 = vmatprep.subr.mxu0 0.0
    %470 = vmatpush1.msra.mxu0 0.0
    %471 = vmatprep.subr.mxu0 0.0
    %472 = vmatpush1.msra.mxu0 0.0
    %473 = vmatprep.subr.mxu0 0.0
    %474 = vmatpush1.msra.mxu0 0.0
    %475 = vmatprep.subr.mxu0 0.0
    %476 = vmatpush1.msra.mxu0 0.0
    %477 = vmatprep.subr.mxu0 0.0
    %478 = vmatpush1.msra.mxu0 0.0
    %479 = vmatprep.subr.mxu0 0.0
    %480 = vmatpush1.msra.mxu0 0.0
    %481 = vmatprep.subr.mxu0 0.0
    %482 = vmatpush1.msra.mxu0 0.0
    %483 = vmatprep.subr.mxu0 0.0
    %484 = vmatpush1.msra.mxu0 0.0
    %485 = vmatprep.subr.mxu0 0.0
    %486 = vmatpush1.msra.mxu0 0.0
    %487 = vmatprep.subr.mxu0 0.0
    %488 = vmatpush1.msra.mxu0 0.0
    %489 = vmatprep.subr.mxu0 0.0
    %490 = vmatpush1.msra.mxu0 0.0
    %491 = vmatprep.subr.mxu0 0.0
    %492 = vmatpush1.msra.mxu0 0.0
    %493 = vmatprep.subr.mxu0 0.0
    %494 = vmatpush1.msra.mxu0 0.0
    %495 = vmatprep.subr.mxu0 0.0
    %496 = vmatpush1.msra.mxu0 0.0
    %497 = vmatprep.subr.mxu0 0.0
    %498 = vmatpush1.msra.mxu0 0.0
    %499 = vmatprep.subr.mxu0 0.0
    %500 = vmatpush1.msra.mxu0 0.0
    %501 = vmatprep.subr.mxu0 0.0
    %502 = vmatpush1.msra.mxu0 0.0
    %503 = vmatprep.subr.mxu0 0.0
    %504 = vmatpush1.msra.mxu0 0.0
    %505 = vmatprep.subr.mxu0 0.0
    %506 = vmatpush1.msra.mxu0 0.0
    %507 = vmatprep.subr.mxu0 0.0
    %508 = vmatpush1.msra.mxu0 0.0
    %509 = vmatprep.subr.mxu0 0.0
    %510 = vmatpush1.msra.mxu0 0.0
    %511 = vmatprep.subr.mxu0 0.0
    %512 = vmatpush1.msra.mxu0 0.0
    %513 = vmatprep.mubr.f32.mxu0 0.0
    %v514 = vand.u32 %v55, 4294901760
    %515 = vmatmul.mubr.f32.gmra.mrb[0].mxu0 %v514
    %v516 = vpop.f32.mrb[0].mxu0
    %v517 = vadd.f32 %v444, %v516
    %v518 = vpop.f32.mrb[0].mxu0
    %519 = vdwg.mxu0
    %v520 = vsub.f32 %v35, %v517
    %v521 = vmul.f32 %v520, %v520
    %v522 = vld [vmem:[#allocation5] sm:$0xff]
    %v523 = vadd.f32 %v522, %v521
    %524 = vst [vmem:[#allocation5] sm:$0xff] %v523
    // Predicated region
    $region26: #{tpu_custom_call.1} parent=1 // pred_check
      _
    $region27: #{tpu_custom_call.1} parent=1 // pred_check_branch
      %526 = sbr.rel (0) target = $region29
    $region28: #{tpu_custom_call.1} parent=1 // pred_region
      %s528 = ssub.s32 128, 128
      %529 = vsyncadd [#allocation4], %s528
      %s531 = sshll.u32 [#allocation5], 4
      %s532 = int_to_ptr.vmem [resolvable:$true] %s531
      %534 = dma.vmem_to_hbm [thread:$0]  %s532, 128, %s4, [#allocation4]
    $region29: #{tpu_custom_call.1} parent=1 // pred_fallthru
      _
    // Predicated region
    $region30: #{tpu_custom_call.1} parent=1 // pred_check
      _
    $region31: #{tpu_custom_call.1} parent=1 // pred_check_branch
      %536 = sbr.rel (0) target = $region33
    $region32: #{tpu_custom_call.1} parent=1 // pred_region
      %537 = dma.done [#allocation4], 128
    $region33: #{tpu_custom_call.1} parent=1 // pred_fallthru
      _
    %538 = vsyncpa [#allocation3], 1
    %539 = vsyncpa [#allocation4], 1

</llo_original>
